<compile_context>
chip_gen: v7x
topology: tpu7x:2x2x1
jax: 0.10.0
libtpu: 0.0.40
codegen_flags: <defaults>
</compile_context>

<pallas_src>
import functools

import jax
import jax.numpy as jnp
from jax import lax
from jax.experimental import pallas as pl
from jax.experimental.pallas import tpu as pltpu

_LANES = 128
_CHUNK_ROWS = 1024                 # in-kernel chunk: 512 KiB f32 / 256 KiB bf16 per input
_TARGET_BLOCK_BYTES = 4 << 20      # ~4 MiB per input per grid step


def _round_up(x, m):
    return ((x + m - 1) // m) * m


def _cdiv(a, b):
    return -(-a // b)


def _sublane_align(dtype):
    # Native sublane packing: f32 -> 8, bf16/f16 -> 16, int8/fp8 -> 32.
    return max(8, 32 // jnp.dtype(dtype).itemsize)


def _pick_k(chunk_rows):
    # Number of interleaved (8,128) accumulators; chunk_rows % (8*K) == 0.
    for k in (8, 4, 2, 1):
        if chunk_rows % (8 * k) == 0:
            return k
    return 1


def _make_loss_kernel(total_rows, block_rows, chunk_rows, k, needs_mask):
    """Per grid step: accumulate |d| and d^2 over a (block_rows, 128) tile and
    emit a packed (2, 8, 128) f32 partial (row 0 = L1, row 1 = L2)."""
    num_chunks = block_rows // chunk_rows
    groups = chunk_rows // (8 * k)

    def kernel(xr_ref, nz_ref, out_ref, acc_ref):
        acc_ref[...] = jnp.zeros_like(acc_ref)

        def load_chunk(r0):
            x = xr_ref[pl.ds(r0, chunk_rows), :].astype(jnp.float32)
            n = nz_ref[pl.ds(r0, chunk_rows), :].astype(jnp.float32)
            return n - x

        def accumulate(d):
            # (chunk, 128) -> (groups, K, 8, 128): pure leading-dim reshape of
            # the native (8,128) tiling; sum over axis 0 is K*2 independent
            # accumulator vregs (short dependent chains, hidden under DMA).
            g = d.reshape(groups, k, 8, _LANES)
            acc_ref[0] += jnp.sum(jnp.abs(g), axis=0)
            acc_ref[1] += jnp.sum(g * g, axis=0)

        if needs_mask:
            # Valid rows in this block; >= block_rows for every non-last block.
            lim = total_rows - pl.program_id(0) * block_rows
            n_valid = jnp.minimum(jnp.int32(block_rows), lim)
            n_full = n_valid // chunk_rows
        else:
            n_full = num_chunks

        @pl.loop(0, n_full)
        def _(c):
            r0 = pl.multiple_of(c * chunk_rows, chunk_rows)
            accumulate(load_chunk(r0))

        if needs_mask:
            # Only the single partial chunk of the last block pays for the
            # iota/compare/select; chunks entirely past the valid extent are
            # never touched (no garbage reads).
            rem = n_valid - n_full * chunk_rows

            @pl.when(rem > 0)
            def _():
                r0 = pl.multiple_of(n_full * chunk_rows, chunk_rows)
                d = load_chunk(r0)
                rid = lax.broadcasted_iota(jnp.int32, d.shape, 0)
                accumulate(jnp.where(rid < rem, d, jnp.float32(0.0)))

        # Fold the K interleaved accumulators; packed (2, 8, 128) output block.
        out_ref[0] = jnp.sum(acc_ref[0], axis=0)
        out_ref[1] = jnp.sum(acc_ref[1], axis=0)

    return kernel


def _xla_loss(x_recon, noise):
    d = noise.astype(jnp.float32) - x_recon.astype(jnp.float32)
    return jnp.mean(jnp.abs(d)), jnp.mean(d * d)


def diffusion_loss(x_recon, noise, *, max_block_rows=None,
                   min_pallas_elems=1 << 20, force_pallas=False):
    """Returns (L1_loss, L2_loss) as f32 scalars. L2_loss matches the PyTorch
    module's return value (F.mse_loss with default 'mean' reduction)."""
    assert x_recon.shape == noise.shape, "shape mismatch"
    n_elems = x_recon.size
    rows = n_elems // _LANES
    tail = n_elems % _LANES

    # TODO(synk): numel % 128 != 0 (never the case for B*C*H*W diffusion
    # tensors) would need a full pad/slice copy (~3x HBM traffic) to become
    # lane-dense; the single-pass fused XLA reduce is faster there.
    small = (not force_pallas) and n_elems < min_pallas_elems
    if small or tail != 0 or rows == 0:
        return _xla_loss(x_recon, noise)

    align = max(_sublane_align(x_recon.dtype), _sublane_align(noise.dtype))
    itemsize = max(jnp.dtype(x_recon.dtype).itemsize,
                   jnp.dtype(noise.dtype).itemsize)

    if max_block_rows is None:
        # ~4 MiB per input per grid step: 8192 rows f32, 16384 rows bf16.
        max_block_rows = _TARGET_BLOCK_BYTES // (_LANES * itemsize)
    # Sanitize: multiple of the sublane alignment, and of the chunk size once
    # blocks are big enough to be chunked.
    max_block_rows = _round_up(max(int(max_block_rows), align), align)
    if max_block_rows >= _CHUNK_ROWS:
        max_block_rows = _round_up(max_block_rows, _CHUNK_ROWS)

    if rows <= 2 * align:
        # Tiny: single block; zero-pads at most (align-1) rows (< 8 KiB).
        block_rows = _round_up(rows, align)
    elif rows >= 2 * max_block_rows:
        block_rows = max_block_rows
    else:
        # Medium: split into >= 2 blocks so both v7x TensorCores stream HBM
        # instead of leaving one idle on a 1-block grid.
        half = _round_up(_cdiv(rows, 2), align)
        if half >= _CHUNK_ROWS:
            half = _round_up(half, _CHUNK_ROWS)
        block_rows = min(half, max_block_rows)

    chunk_rows = block_rows if block_rows < _CHUNK_ROWS else _CHUNK_ROWS
    k = _pick_k(chunk_rows)
    num_blocks = _cdiv(rows, block_rows)

    if num_blocks == 1:
        pad_rows = block_rows - rows       # tiny (< align rows); zeros are exact
        needs_mask = False
    else:
        pad_rows = 0
        needs_mask = (num_blocks * block_rows != rows)

    def to_rows(a):
        flat = jnp.reshape(a, (-1,))       # free for contiguous arrays
        if pad_rows:
            flat = jnp.pad(flat, (0, pad_rows * _LANES))
        return flat.reshape(-1, _LANES)

    xr = to_rows(x_recon)
    nz = to_rows(noise)

    in_spec = pl.BlockSpec((block_rows, _LANES), lambda i: (i, 0))
    out_spec = pl.BlockSpec((None, 2, 8, _LANES), lambda i: (i, 0, 0, 0))

    kernel = _make_loss_kernel(rows, block_rows, chunk_rows, k, needs_mask)

    # 2 pipeline buffers per input + slack for chunk temporaries / outputs.
    # (v5e's default scoped VMEM is 16 MiB; the big blocks need ~28 MiB.)
    in_bytes = block_rows * _LANES * (jnp.dtype(x_recon.dtype).itemsize
                                      + jnp.dtype(noise.dtype).itemsize)
    vmem_limit = min(int(2 * in_bytes + (12 << 20)), 48 << 20)

    parts = pl.pallas_call(
        kernel,
        out_shape=jax.ShapeDtypeStruct((num_blocks, 2, 8, _LANES), jnp.float32),
        grid_spec=pltpu.PrefetchScalarGridSpec(
            num_scalar_prefetch=0,
            grid=(num_blocks,),
            in_specs=[in_spec, in_spec],
            out_specs=out_spec,
            scratch_shapes=[pltpu.VMEM((2, k, 8, _LANES), jnp.float32)],
        ),
        compiler_params=pltpu.CompilerParams(
            # Independent per-block partials: lets v7x shard the grid across
            # both TensorCores (no-op on v5e/v6e).
            dimension_semantics=("parallel",),
            vmem_limit_bytes=vmem_limit,
        ),
    )(xr, nz)

    # Tiny epilogue (stays fused in XLA when the wrapper is jitted).
    sums = jnp.sum(parts, axis=(0, 2, 3)) * jnp.float32(1.0 / n_elems)
    return sums[0], sums[1]


if __name__ == "__main__":
    key = jax.random.PRNGKey(0)
    k1, k2 = jax.random.split(key)

    # Small NCHW shapes consistent with a diffusion model output / noise target.
    B, C, H, W = 2, 4, 16, 16
    x_recon = jax.random.normal(k1, (B, C, H, W), dtype=jnp.float32)
    noise = jax.random.normal(k2, (B, C, H, W), dtype=jnp.float32)

    loss_fn = jax.jit(functools.partial(diffusion_loss, force_pallas=True))

    l1_loss, l2_loss = loss_fn(x_recon, noise)
    jax.block_until_ready((l1_loss, l2_loss))
    d = noise - x_recon
    assert jnp.allclose(l1_loss, jnp.mean(jnp.abs(d)), rtol=1e-5, atol=1e-6)
    assert jnp.allclose(l2_loss, jnp.mean(d * d), rtol=1e-5, atol=1e-6)

    # Multi-block + masked partial-chunk path (20 rows of 128, 8-row blocks).
    x2 = jax.random.normal(k1, (2, 4, 16, 20), dtype=jnp.float32)
    n2 = jax.random.normal(k2, (2, 4, 16, 20), dtype=jnp.float32)
    loss_fn_mb = jax.jit(functools.partial(diffusion_loss, force_pallas=True,
                                           max_block_rows=8))
    l1b, l2b = loss_fn_mb(x2, n2)
    jax.block_until_ready((l1b, l2b))
    d2 = n2 - x2
    assert jnp.allclose(l1b, jnp.mean(jnp.abs(d2)), rtol=1e-5, atol=1e-6)
    assert jnp.allclose(l2b, jnp.mean(d2 * d2), rtol=1e-5, atol=1e-6)

    # bf16 inputs: no wrapper-side cast, per-chunk cast inside the kernel.
    xb = x_recon.astype(jnp.bfloat16)
    nb = noise.astype(jnp.bfloat16)
    l1c, l2c = loss_fn(xb, nb)
    jax.block_until_ready((l1c, l2c))
    db = nb.astype(jnp.float32) - xb.astype(jnp.float32)
    assert jnp.allclose(l1c, jnp.mean(jnp.abs(db)), rtol=1e-5, atol=1e-6)
    assert jnp.allclose(l2c, jnp.mean(db * db), rtol=1e-5, atol=1e-6)

    # Non-128-divisible element count -> single-pass fused-XLA fallback.
    x3 = jax.random.normal(k1, (3, 5, 7), dtype=jnp.float32)
    n3 = jax.random.normal(k2, (3, 5, 7), dtype=jnp.float32)
    l1d, l2d = loss_fn(x3, n3)
    jax.block_until_ready((l1d, l2d))
    d3 = n3 - x3
    assert jnp.allclose(l1d, jnp.mean(jnp.abs(d3)), rtol=1e-5, atol=1e-6)
    assert jnp.allclose(l2d, jnp.mean(d3 * d3), rtol=1e-5, atol=1e-6)

    print("KERNEL_OK")
</pallas_src>

<mosaic_0001>
module attributes {stable_mosaic.version = 11 : i64} {
  func.func @kernel(%arg0: i32, %arg1: memref<16x128xf32, #tpu.memory_space<vmem>>, %arg2: memref<16x128xf32, #tpu.memory_space<vmem>>, %arg3: memref<1x2x8x128xf32, #tpu.memory_space<vmem>>, %arg4: memref<2x2x8x128xf32, #tpu.memory_space<vmem>>) attributes {dimension_semantics = [#tpu.dimension_semantics<parallel>], iteration_bounds = array<i64: 1>, scalar_prefetch = 0 : i64, scratch_operands = 1 : i64, tpu.core_type = #tpu.core_type<tc>, window_params = [{transform_indices = @transform_0, window_bounds = array<i64: 16, 128>}, {transform_indices = @transform_1, window_bounds = array<i64: 16, 128>}, {transform_indices = @transform_2, window_bounds = array<i64: 1, 2, 8, 128>}]} {
    %cst = arith.constant 0.000000e+00 : f32
    %0 = vector.broadcast %cst : f32 to vector<2x2x8x128xf32>
    %c0 = arith.constant 0 : index
    %c0_0 = arith.constant 0 : index
    %c0_1 = arith.constant 0 : index
    %c0_2 = arith.constant 0 : index
    %1 = vector.load %arg4[%c0, %c0_0, %c0_1, %c0_2] : memref<2x2x8x128xf32, #tpu.memory_space<vmem>>, vector<2x2x8x128xf32>
    tpu.vector_store %arg4[%c0, %c0_0, %c0_1, %c0_2], %0 {strides = array<i32>} : memref<2x2x8x128xf32, #tpu.memory_space<vmem>>, vector<2x2x8x128xf32>,
    %c0_i32 = arith.constant 0 : i32
    %c1_i32 = arith.constant 1 : i32
    %2 = arith.muli %c0_i32, %c1_i32 : i32
    %c0_i32_3 = arith.constant 0 : i32
    %3 = arith.addi %c0_i32_3, %2 : i32
    %c16_i32 = arith.constant 16 : i32
    %4 = arith.muli %3, %c16_i32 : i32
    %5 = tpu.assume_multiple %4, 16 : i32
    %6 = arith.index_cast %5 : i32 to index
    %c0_4 = arith.constant 0 : index
    %7 = vector.load %arg1[%6, %c0_4] : memref<16x128xf32, #tpu.memory_space<vmem>>, vector<16x128xf32>
    %8 = arith.index_cast %5 : i32 to index
    %c0_5 = arith.constant 0 : index
    %9 = vector.load %arg2[%8, %c0_5] : memref<16x128xf32, #tpu.memory_space<vmem>>, vector<16x128xf32>
    %10 = arith.subf %9, %7 : vector<16x128xf32>
    %11 = vector.shape_cast %10 : vector<16x128xf32> to vector<1x2x8x128xf32>
    %c0_6 = arith.constant 0 : index
    %c0_7 = arith.constant 0 : index
    %c0_8 = arith.constant 0 : index
    %c0_9 = arith.constant 0 : index
    %12 = vector.load %arg4[%c0_6, %c0_7, %c0_8, %c0_9] : memref<2x2x8x128xf32, #tpu.memory_space<vmem>>, vector<1x2x8x128xf32>
    %13 = vector.shape_cast %12 : vector<1x2x8x128xf32> to vector<2x8x128xf32>
    %14 = math.absf %11 : vector<1x2x8x128xf32>
    %cst_10 = arith.constant dense<0.000000e+00> : vector<2x8x128xf32>
    %15 = vector.multi_reduction <add>, %14, %cst_10 [0] : vector<1x2x8x128xf32> to vector<2x8x128xf32>
    %16 = arith.addf %13, %15 : vector<2x8x128xf32>
    %c0_11 = arith.constant 0 : index
    %c0_12 = arith.constant 0 : index
    %c0_13 = arith.constant 0 : index
    %c0_14 = arith.constant 0 : index
    %17 = vector.load %arg4[%c0_11, %c0_12, %c0_13, %c0_14] : memref<2x2x8x128xf32, #tpu.memory_space<vmem>>, vector<1x2x8x128xf32>
    %18 = vector.shape_cast %17 : vector<1x2x8x128xf32> to vector<2x8x128xf32>
    %19 = vector.shape_cast %16 : vector<2x8x128xf32> to vector<1x2x8x128xf32>
    tpu.vector_store %arg4[%c0_11, %c0_12, %c0_13, %c0_14], %19 {strides = array<i32>} : memref<2x2x8x128xf32, #tpu.memory_space<vmem>>, vector<1x2x8x128xf32>,
    %c1 = arith.constant 1 : index
    %c0_15 = arith.constant 0 : index
    %c0_16 = arith.constant 0 : index
    %c0_17 = arith.constant 0 : index
    %20 = vector.load %arg4[%c1, %c0_15, %c0_16, %c0_17] : memref<2x2x8x128xf32, #tpu.memory_space<vmem>>, vector<1x2x8x128xf32>
    %21 = vector.shape_cast %20 : vector<1x2x8x128xf32> to vector<2x8x128xf32>
    %22 = arith.mulf %11, %11 : vector<1x2x8x128xf32>
    %cst_18 = arith.constant dense<0.000000e+00> : vector<2x8x128xf32>
    %23 = vector.multi_reduction <add>, %22, %cst_18 [0] : vector<1x2x8x128xf32> to vector<2x8x128xf32>
    %24 = arith.addf %21, %23 : vector<2x8x128xf32>
    %c1_19 = arith.constant 1 : index
    %c0_20 = arith.constant 0 : index
    %c0_21 = arith.constant 0 : index
    %c0_22 = arith.constant 0 : index
    %25 = vector.load %arg4[%c1_19, %c0_20, %c0_21, %c0_22] : memref<2x2x8x128xf32, #tpu.memory_space<vmem>>, vector<1x2x8x128xf32>
    %26 = vector.shape_cast %25 : vector<1x2x8x128xf32> to vector<2x8x128xf32>
    %27 = vector.shape_cast %24 : vector<2x8x128xf32> to vector<1x2x8x128xf32>
    tpu.vector_store %arg4[%c1_19, %c0_20, %c0_21, %c0_22], %27 {strides = array<i32>} : memref<2x2x8x128xf32, #tpu.memory_space<vmem>>, vector<1x2x8x128xf32>,
    %c1_i32_23 = arith.constant 1 : i32
    %c0_24 = arith.constant 0 : index
    %c0_25 = arith.constant 0 : index
    %c0_26 = arith.constant 0 : index
    %c0_27 = arith.constant 0 : index
    %28 = vector.load %arg4[%c0_24, %c0_25, %c0_26, %c0_27] : memref<2x2x8x128xf32, #tpu.memory_space<vmem>>, vector<1x2x8x128xf32>
    %29 = vector.shape_cast %28 : vector<1x2x8x128xf32> to vector<2x8x128xf32>
    %cst_28 = arith.constant dense<0.000000e+00> : vector<8x128xf32>
    %30 = vector.multi_reduction <add>, %29, %cst_28 [0] : vector<2x8x128xf32> to vector<8x128xf32>
    %c0_29 = arith.constant 0 : index
    %c0_30 = arith.constant 0 : index
    %c0_31 = arith.constant 0 : index
    %c0_32 = arith.constant 0 : index
    %31 = vector.load %arg3[%c0_29, %c0_30, %c0_31, %c0_32] : memref<1x2x8x128xf32, #tpu.memory_space<vmem>>, vector<1x1x8x128xf32>
    %32 = vector.shape_cast %31 : vector<1x1x8x128xf32> to vector<8x128xf32>
    %33 = vector.shape_cast %30 : vector<8x128xf32> to vector<1x1x8x128xf32>
    tpu.vector_store %arg3[%c0_29, %c0_30, %c0_31, %c0_32], %33 {strides = array<i32>} : memref<1x2x8x128xf32, #tpu.memory_space<vmem>>, vector<1x1x8x128xf32>,
    %c1_33 = arith.constant 1 : index
    %c0_34 = arith.constant 0 : index
    %c0_35 = arith.constant 0 : index
    %c0_36 = arith.constant 0 : index
    %34 = vector.load %arg4[%c1_33, %c0_34, %c0_35, %c0_36] : memref<2x2x8x128xf32, #tpu.memory_space<vmem>>, vector<1x2x8x128xf32>
    %35 = vector.shape_cast %34 : vector<1x2x8x128xf32> to vector<2x8x128xf32>
    %cst_37 = arith.constant dense<0.000000e+00> : vector<8x128xf32>
    %36 = vector.multi_reduction <add>, %35, %cst_37 [0] : vector<2x8x128xf32> to vector<8x128xf32>
    %c0_38 = arith.constant 0 : index
    %c1_39 = arith.constant 1 : index
    %c0_40 = arith.constant 0 : index
    %c0_41 = arith.constant 0 : index
    %37 = vector.load %arg3[%c0_38, %c1_39, %c0_40, %c0_41] : memref<1x2x8x128xf32, #tpu.memory_space<vmem>>, vector<1x1x8x128xf32>
    %38 = vector.shape_cast %37 : vector<1x1x8x128xf32> to vector<8x128xf32>
    %39 = vector.shape_cast %36 : vector<8x128xf32> to vector<1x1x8x128xf32>
    tpu.vector_store %arg3[%c0_38, %c1_39, %c0_40, %c0_41], %39 {strides = array<i32>} : memref<1x2x8x128xf32, #tpu.memory_space<vmem>>, vector<1x1x8x128xf32>,
    return
  }
  func.func @transform_0(%arg0: i32) -> (i32, i32) {
    %c0_i32 = arith.constant 0 : i32
    %c0_i32_0 = arith.constant 0 : i32
    return %arg0, %c0_i32 : i32, i32
  }
  func.func @transform_1(%arg0: i32) -> (i32, i32) {
    %c0_i32 = arith.constant 0 : i32
    %c0_i32_0 = arith.constant 0 : i32
    return %arg0, %c0_i32 : i32, i32
  }
  func.func @transform_2(%arg0: i32) -> (i32, i32, i32, i32) {
    %c0_i32 = arith.constant 0 : i32
    %c0_i32_0 = arith.constant 0 : i32
    %c0_i32_1 = arith.constant 0 : i32
    %c0_i32_2 = arith.constant 0 : i32
    return %arg0, %c0_i32, %c0_i32_0, %c0_i32_1 : i32, i32, i32, i32
  }
}

</mosaic_0001>

<llo_original>
// kernel: diffusion_loss.1
$region0: #{diffusion_loss.1}
  #allocation0 [shape = 'u32[]', space=smem, size = 0x4, offset = 0x4, fixed_abs, tag = 'smem constant byte address 0x4 - core index']
  #allocation1 [shape = 'u32[144,128]{1,0:T(1,128)}', space=vmem, size = 0x12000, scoped, tag = 'internal scratch']
  #allocation2 [shape = 'f32[2,2,8,128]{3,2,1,0:T(8,128)}', space=vmem, size = 0x4000, scoped, tag = 'scratch operand']
  %s0 = inlined_call_operand.vmem [shape: f32[16,128], index: 0, kind: input, shape index: {}]
  %s1 = inlined_call_operand.vmem [shape: f32[16,128], index: 1, kind: input, shape index: {}]
  %s2 = inlined_call_operand.vmem [shape: f32[1,2,8,128], index: 2, kind: output, shape index: {}]
  %s3 = sld [smem:[#allocation0]]
  $region18: #{diffusion_loss.1} parent=0
    _
  %s5 = ssub.s32 1, %s3
  %s6 = scalar_select 0, %s5, %s3
  // Predicated region
  $region2: #{diffusion_loss.1} parent=0 // pred_check
    _
  $region3: #{diffusion_loss.1} parent=0 // pred_check_branch
    %8 = sbr.rel (0) target = $region5
  $region4: #{diffusion_loss.1} parent=0 // pred_region
    _
  $region5: #{diffusion_loss.1} parent=0 // pred_fallthru
    _
  // Predicated region
  $region6: #{diffusion_loss.1} parent=0 // pred_check
    _
  $region7: #{diffusion_loss.1} parent=0 // pred_check_branch
    %10 = sbr.rel (0) target = $region9
  $region8: #{diffusion_loss.1} parent=0 // pred_region
    _
  $region9: #{diffusion_loss.1} parent=0 // pred_fallthru
    _
  %11 = vst [vmem:[#allocation2] sm:$0xff] 0.0
  %12 = vst [vmem:[#allocation2 + $0x8] sm:$0xff] 0.0
  %13 = vst [vmem:[#allocation2 + $0x10] sm:$0xff] 0.0
  %14 = vst [vmem:[#allocation2 + $0x18] sm:$0xff] 0.0
  %v15 = vld [vmem:[%s0] sm:$0xff]
  %v16 = vld [vmem:[%s0 + $0x8] sm:$0xff]
  %v17 = vld [vmem:[%s1] sm:$0xff]
  %v18 = vld [vmem:[%s1 + $0x8] sm:$0xff]
  %v19 = vsub.f32 %v17, %v15
  %v20 = vsub.f32 %v18, %v16
  %v21 = vld [vmem:[#allocation2] sm:$0xff]
  %v22 = vld [vmem:[#allocation2 + $0x8] sm:$0xff]
  %v23 = vand.u32 2147483647, %v19
  %v24 = vand.u32 2147483647, %v20
  %v25 = vadd.f32 %v23, 0.0
  %v26 = vadd.f32 %v24, 0.0
  %v27 = vadd.f32 %v21, %v25
  %v28 = vadd.f32 %v22, %v26
  %29 = vst [vmem:[#allocation2] sm:$0xff] %v27
  %30 = vst [vmem:[#allocation2 + $0x8] sm:$0xff] %v28
  %s31 = scalar_lea.vmem [#allocation2], 16
  %v32 = vld [vmem:[%s31] sm:$0xff]
  %v33 = vld [vmem:[%s31 + $0x8] sm:$0xff]
  %v34 = vmul.f32 %v19, %v19
  %v35 = vmul.f32 %v20, %v20
  %v36 = vadd.f32 %v34, 0.0
  %v37 = vadd.f32 %v35, 0.0
  %v38 = vadd.f32 %v32, %v36
  %v39 = vadd.f32 %v33, %v37
  %40 = vst [vmem:[%s31] sm:$0xff] %v38
  %41 = vst [vmem:[%s31 + $0x8] sm:$0xff] %v39
  %v42 = vld [vmem:[#allocation2] sm:$0xff]
  %v43 = vld [vmem:[#allocation2 + $0x8] sm:$0xff]
  %v44 = vadd.f32 %v42, %v43
  %45 = vst [vmem:[%s2] sm:$0xff] %v44
  %v46 = vld [vmem:[%s31] sm:$0xff]
  %v47 = vld [vmem:[%s31 + $0x8] sm:$0xff]
  %v48 = vadd.f32 %v46, %v47
  %s49 = scalar_lea.vmem %s2, 8
  %50 = vst [vmem:[%s49] sm:$0xff] %v48
  // Predicated region
  $region10: #{diffusion_loss.1} parent=0 // pred_check
    _
  $region11: #{diffusion_loss.1} parent=0 // pred_check_branch
    %52 = sbr.rel (0) target = $region13
  $region12: #{diffusion_loss.1} parent=0 // pred_region
    _
  $region13: #{diffusion_loss.1} parent=0 // pred_fallthru
    _
  // Predicated region
  $region14: #{diffusion_loss.1} parent=0 // pred_check
    _
  $region15: #{diffusion_loss.1} parent=0 // pred_check_branch
    %54 = sbr.rel (0) target = $region17
  $region16: #{diffusion_loss.1} parent=0 // pred_region
    _
  $region17: #{diffusion_loss.1} parent=0 // pred_fallthru
    _

</llo_original>
